<compile_context>
chip_gen: v5e
topology: v5e:2x2
jax: 0.10.0
libtpu: 0.0.40
codegen_flags: <defaults>
</compile_context>

<pallas_src>
import functools

import jax
import jax.numpy as jnp
from jax.experimental import pallas as pl
from jax.experimental.pallas import tpu as pltpu


# ---------------------------------------------------------------------------
# Bilinear x2 helpers (match F.interpolate(scale_factor=2, mode='bilinear',
# align_corners=False, antialias=False)).
# ---------------------------------------------------------------------------
def _src_index_weights(out_size, in_size):
    o = jnp.arange(out_size, dtype=jnp.float32)
    src = (o + 0.5) * (in_size / out_size) - 0.5
    src = jnp.maximum(src, 0.0)                      # PyTorch clamps negatives
    i0 = jnp.minimum(jnp.floor(src).astype(jnp.int32), in_size - 1)
    i1 = jnp.minimum(i0 + 1, in_size - 1)
    w1 = src - i0.astype(jnp.float32)
    w0 = 1.0 - w1
    return i0, i1, w0, w1


def _bilinear_matrix(out_size, in_size):
    """Dense (out_size, in_size) interpolation matrix for one axis."""
    i0, i1, w0, w1 = _src_index_weights(out_size, in_size)
    return (w0[:, None] * jax.nn.one_hot(i0, in_size, dtype=jnp.float32)
            + w1[:, None] * jax.nn.one_hot(i1, in_size, dtype=jnp.float32))


def bilinear_upsample_x2(g):
    """Gather-based reference upsample (used only by the pure-JAX reference)."""
    _, _, H, W = g.shape
    h0, h1, wh0, wh1 = _src_index_weights(2 * H, H)
    w0, w1, ww0, ww1 = _src_index_weights(2 * W, W)
    g_h = (g[:, :, h0, :] * wh0[None, None, :, None]
           + g[:, :, h1, :] * wh1[None, None, :, None])
    return g_h[:, :, :, w0] * ww0 + g_h[:, :, :, w1] * ww1


# ---------------------------------------------------------------------------
# Pallas kernel.  Per grid step (image n, row band b):
#   x_ref   : (1, Cx, th*W)   x band (channels-first, flat pixels)
#   a_ref   : (1, Ci, thg*W)  g-path term (W_g conv + W-upsample), half height
#   ht_ref  : (1, 1, Ci, W)   coarse row just above the band (edge-clamped)
#   hb_ref  : (1, 1, Ci, W)   coarse row just below the band (edge-clamped)
#   wx_ref  : (Ci, Cx)        1x1 conv weight for x
#   phi_ref : (1, Ci)         1x1 conv weight for phi (f32)
#   o_ref   : (1, Cx, th*W)   gated output band
#   s_ref   : (Ci, th*W) f32  scratch; fully overwritten every grid step
# ---------------------------------------------------------------------------
def _attention_gate_kernel(x_ref, a_ref, ht_ref, hb_ref, wx_ref, phi_ref,
                           o_ref, s_ref, *, thg, width):
    f32 = jnp.float32
    a = a_ref[0]                                               # (Ci, thg*W)
    top = ht_ref[0, 0]                                         # (Ci, W)
    bot = hb_ref[0, 0]                                         # (Ci, W)

    # H-direction bilinear x2 (align_corners=False): 2-tap VPU blends only,
    # no MXU work, no relayouts.  Every column of s_ref is rewritten each step
    # (s_ref persists across grid steps, so full overwrite is required).
    for m in range(thg):
        prev = top if m == 0 else a[:, (m - 1) * width:m * width]
        cur = a[:, m * width:(m + 1) * width]
        nxt = bot if m == thg - 1 else a[:, (m + 1) * width:(m + 2) * width]
        cur_f = cur.astype(f32)
        s_ref[:, (2 * m) * width:(2 * m + 1) * width] = (
            0.25 * prev.astype(f32) + 0.75 * cur_f)
        s_ref[:, (2 * m + 1) * width:(2 * m + 2) * width] = (
            0.75 * cur_f + 0.25 * nxt.astype(f32))

    # x-path 1x1 conv AFTER the upsample (only one band-sized f32 value live):
    # a single lane-dense MXU matmul over the whole band, f32 accumulation.
    x = x_ref[0]                                               # (Cx, th*W)
    s = s_ref[...] + jnp.dot(wx_ref[...], x, preferred_element_type=f32)
    s = jnp.maximum(s, 0.0)                                    # ReLU

    # phi as a (1, Ci) @ (Ci, th*W) matmul -> lane-dense attention logits.
    q = jnp.dot(phi_ref[...], s, preferred_element_type=f32)   # (1, th*W)
    att = jax.nn.sigmoid(q)
    o_ref[0] = (x.astype(f32) * att).astype(o_ref.dtype)


# ---------------------------------------------------------------------------
# Band sizing: largest half-height row band thg (output band = 2*thg rows)
# that tiles Hg, keeps blocks lane-aligned, and fits the VMEM budget.
# ---------------------------------------------------------------------------
def _pick_band_rows(N, Hg, W, Cx, Ci, in_bytes, out_bytes, vmem_budget):
    def footprint(thg):
        th = 2 * thg
        return (2 * Cx * th * W * in_bytes        # x input band, double-buffered
                + 2 * Cx * th * W * out_bytes     # output band, double-buffered
                + 2 * Ci * thg * W * in_bytes     # g-term band, double-buffered
                + 4 * Ci * W * in_bytes           # halo rows
                + Ci * th * W * 4)                # f32 scratch

    feasible = [t for t in range(1, Hg + 1)
                if Hg % t == 0 and (t == Hg or (t * W) % 128 == 0)]
    fits = [t for t in feasible if footprint(t) <= vmem_budget]
    thg = max(fits) if fits else min(feasible, key=footprint)
    # v7x has two TensorCores sharing the parallel grid axes: make sure there
    # are at least two grid steps when the shapes allow it.
    if N * (Hg // thg) < 2:
        multi = [t for t in (fits if fits else feasible) if Hg // t >= 2]
        if multi:
            thg = max(multi)
    return thg


@functools.partial(jax.jit,
                   static_argnames=("thg", "vmem_limit", "compute_dtype"))
def _attention_gates_impl(x, g, w_x, w_g, w_phi, *, thg, vmem_limit,
                          compute_dtype):
    N, Cx, H, W = x.shape
    _, Cg, Hg, Wg = g.shape
    Ci = w_x.shape[0]
    th = 2 * thg
    n_bands = Hg // thg
    cd = compute_dtype

    # g path at LOW resolution in the wrapper: 1x1 W_g conv (commutes with the
    # bilinear upsample) + W-direction upsample only.  The H-direction upsample
    # is fused into the kernel, so the g-term in HBM stays at half size and the
    # 4x-sized g_up is never materialized.
    Uw = _bilinear_matrix(W, Wg)                         # (W, Wg)
    a_low = jnp.einsum("nchw,kc->nkhw", g, w_g)          # (N, Ci, Hg, Wg)
    a_w = jnp.einsum("nkhv,wv->nkhw", a_low, Uw)         # (N, Ci, Hg, W)

    # Per-band halo rows (coarse rows just above / below each band, clamped).
    bands = jnp.arange(n_bands)
    top_idx = jnp.maximum(bands * thg - 1, 0)
    bot_idx = jnp.minimum((bands + 1) * thg, Hg - 1)
    halo_top = jnp.transpose(a_w[:, :, top_idx, :], (0, 2, 1, 3)).astype(cd)
    halo_bot = jnp.transpose(a_w[:, :, bot_idx, :], (0, 2, 1, 3)).astype(cd)

    a_flat = a_w.reshape(N, Ci, Hg * W).astype(cd)       # pure reshape + cast
    x_flat = x.reshape(N, Cx, H * W).astype(cd)          # pure reshape, no transpose
    wx = w_x.astype(cd)
    phi = w_phi.astype(jnp.float32)

    kernel = functools.partial(_attention_gate_kernel, thg=thg, width=W)

    out = pl.pallas_call(
        kernel,
        out_shape=jax.ShapeDtypeStruct((N, Cx, H * W), x.dtype),
        grid_spec=pltpu.PrefetchScalarGridSpec(
            num_scalar_prefetch=0,
            grid=(N, n_bands),
            in_specs=[
                pl.BlockSpec((1, Cx, th * W), lambda n, b: (n, 0, b)),
                pl.BlockSpec((1, Ci, thg * W), lambda n, b: (n, 0, b)),
                pl.BlockSpec((1, 1, Ci, W), lambda n, b: (n, b, 0, 0)),
                pl.BlockSpec((1, 1, Ci, W), lambda n, b: (n, b, 0, 0)),
                pl.BlockSpec((Ci, Cx), lambda n, b: (0, 0),
                             pipeline_mode=pl.Buffered(1)),
                pl.BlockSpec((1, Ci), lambda n, b: (0, 0),
                             pipeline_mode=pl.Buffered(1)),
            ],
            out_specs=pl.BlockSpec((1, Cx, th * W), lambda n, b: (n, 0, b)),
            scratch_shapes=[pltpu.VMEM((Ci, th * W), jnp.float32)],
        ),
        compiler_params=pltpu.CompilerParams(
            dimension_semantics=("parallel", "parallel"),
            vmem_limit_bytes=vmem_limit),
    )(x_flat, a_flat, halo_top, halo_bot, wx, phi)

    return out.reshape(N, Cx, H, W)                      # pure reshape


def attention_gates(x, g, w_x, w_g, w_phi, compute_dtype=jnp.bfloat16):
    """x: (N, Cx, H, W); g: (N, Cg, H//2, W//2).
    w_x: (Ci, Cx), w_g: (Ci, Cg), w_phi: (1, Ci)  (== conv weight[:, :, 0, 0]).
    """
    N, Cx, H, W = x.shape
    _, Cg, Hg, Wg = g.shape
    Ci = w_x.shape[0]
    assert H == 2 * Hg and W == 2 * Wg, "g must be at half resolution of x"

    try:
        vmem_cap = int(pltpu.get_tpu_info().vmem_capacity_bytes)
    except Exception:
        vmem_cap = 64 * 1024 * 1024                      # conservative default
    in_bytes = jnp.dtype(compute_dtype).itemsize
    out_bytes = jnp.dtype(x.dtype).itemsize
    thg = _pick_band_rows(N, Hg, W, Cx, Ci, in_bytes, out_bytes,
                          int(0.45 * vmem_cap))
    vmem_limit = int(0.85 * vmem_cap)

    return _attention_gates_impl(x, g, w_x, w_g, w_phi, thg=thg,
                                 vmem_limit=vmem_limit,
                                 compute_dtype=compute_dtype)


# ---------------------------------------------------------------------------
# Pure-JAX reference in the original PyTorch op order (upsample -> convs).
# ---------------------------------------------------------------------------
def attention_gates_ref(x, g, w_x, w_g, w_phi):
    g_up = bilinear_upsample_x2(g)
    s = (jnp.einsum("nchw,kc->nkhw", g_up, w_g)
         + jnp.einsum("nchw,kc->nkhw", x, w_x))
    r = jnp.maximum(s, 0.0)
    q = jnp.einsum("nkhw,k->nhw", r, w_phi[0])[:, None]        # (N, 1, H, W)
    return x * jax.nn.sigmoid(q)


if __name__ == "__main__":
    # Small shapes implied by the module: x at full res, g at half res.
    N, Cx, Cg, Ci, H, W = 2, 4, 8, 8, 16, 16

    key = jax.random.PRNGKey(0)
    kx, kg, kwx, kwg, kphi = jax.random.split(key, 5)

    x = jax.random.normal(kx, (N, Cx, H, W), dtype=jnp.float32)
    g = jax.random.normal(kg, (N, Cg, H // 2, W // 2), dtype=jnp.float32)

    # 1x1-conv weights as (C_out, C_in) matrices (== conv weight[:, :, 0, 0]);
    # module has bias=False everywhere and no BatchNorm.
    w_x = 0.1 * jax.random.normal(kwx, (Ci, Cx), dtype=jnp.float32)
    w_g = 0.1 * jax.random.normal(kwg, (Ci, Cg), dtype=jnp.float32)
    w_phi = 0.1 * jax.random.normal(kphi, (1, Ci), dtype=jnp.float32)

    ref = attention_gates_ref(x, g, w_x, w_g, w_phi)

    # Default (bandwidth-optimized) bf16 compute path.
    out = attention_gates(x, g, w_x, w_g, w_phi)
    out = jax.block_until_ready(out)
    assert out.shape == (N, Cx, H, W)
    assert jnp.allclose(out, ref, atol=5e-2, rtol=5e-2), "bf16 path mismatch"

    # f32 compute path for a tight numerical check against the reference.
    out_f32 = attention_gates(x, g, w_x, w_g, w_phi,
                              compute_dtype=jnp.float32)
    out_f32 = jax.block_until_ready(out_f32)
    assert jnp.allclose(out_f32, ref, atol=2e-4, rtol=2e-4), "f32 path mismatch"

    print("KERNEL_OK")
</pallas_src>

<mosaic_0001>
module attributes {stable_mosaic.version = 11 : i64} {
  func.func @_attention_gate_kernel(%arg0: i32, %arg1: i32, %arg2: memref<1x4x256xbf16, #tpu.memory_space<vmem>>, %arg3: memref<1x8x128xbf16, #tpu.memory_space<vmem>>, %arg4: memref<1x1x8x16xbf16, #tpu.memory_space<vmem>>, %arg5: memref<1x1x8x16xbf16, #tpu.memory_space<vmem>>, %arg6: memref<8x4xbf16, #tpu.memory_space<vmem>>, %arg7: memref<1x8xf32, #tpu.memory_space<vmem>>, %arg8: memref<1x4x256xf32, #tpu.memory_space<vmem>>, %arg9: memref<8x256xf32, #tpu.memory_space<vmem>>) attributes {dimension_semantics = [#tpu.dimension_semantics<parallel>, #tpu.dimension_semantics<parallel>], iteration_bounds = array<i64: 2, 1>, scalar_prefetch = 0 : i64, scratch_operands = 1 : i64, tpu.core_type = #tpu.core_type<tc>, window_params = [{transform_indices = @transform_0, window_bounds = array<i64: 1, 4, 256>}, {transform_indices = @transform_1, window_bounds = array<i64: 1, 8, 128>}, {transform_indices = @transform_2, window_bounds = array<i64: 1, 1, 8, 16>}, {transform_indices = @transform_3, window_bounds = array<i64: 1, 1, 8, 16>}, {pipeline_mode = #tpu.pipeline_mode<synchronous>, transform_indices = @transform_4, window_bounds = array<i64: 8, 4>}, {pipeline_mode = #tpu.pipeline_mode<synchronous>, transform_indices = @transform_5, window_bounds = array<i64: 1, 8>}, {transform_indices = @transform_6, window_bounds = array<i64: 1, 4, 256>}]} {
    %c0 = arith.constant 0 : index
    %c0_0 = arith.constant 0 : index
    %c0_1 = arith.constant 0 : index
    %0 = vector.load %arg3[%c0, %c0_0, %c0_1] : memref<1x8x128xbf16, #tpu.memory_space<vmem>>, vector<1x8x128xbf16>
    %1 = vector.shape_cast %0 : vector<1x8x128xbf16> to vector<8x128xbf16>
    %c0_2 = arith.constant 0 : index
    %c0_3 = arith.constant 0 : index
    %c0_4 = arith.constant 0 : index
    %c0_5 = arith.constant 0 : index
    %2 = vector.load %arg4[%c0_2, %c0_3, %c0_4, %c0_5] : memref<1x1x8x16xbf16, #tpu.memory_space<vmem>>, vector<1x1x8x16xbf16>
    %3 = vector.shape_cast %2 : vector<1x1x8x16xbf16> to vector<8x16xbf16>
    %c0_6 = arith.constant 0 : index
    %c0_7 = arith.constant 0 : index
    %c0_8 = arith.constant 0 : index
    %c0_9 = arith.constant 0 : index
    %4 = vector.load %arg5[%c0_6, %c0_7, %c0_8, %c0_9] : memref<1x1x8x16xbf16, #tpu.memory_space<vmem>>, vector<1x1x8x16xbf16>
    %5 = vector.shape_cast %4 : vector<1x1x8x16xbf16> to vector<8x16xbf16>
    %6 = vector.extract_strided_slice %1 {offsets = [0, 0], sizes = [8, 16], strides = [1, 1]} : vector<8x128xbf16> to vector<8x16xbf16>
    %7 = vector.extract_strided_slice %1 {offsets = [0, 16], sizes = [8, 16], strides = [1, 1]} : vector<8x128xbf16> to vector<8x16xbf16>
    %8 = arith.extf %6 : vector<8x16xbf16> to vector<8x16xf32>
    %9 = arith.extf %3 : vector<8x16xbf16> to vector<8x16xf32>
    %cst = arith.constant 2.500000e-01 : f32
    %10 = vector.broadcast %cst : f32 to vector<8x16xf32>
    %11 = arith.mulf %10, %9 : vector<8x16xf32>
    %cst_10 = arith.constant 7.500000e-01 : f32
    %12 = vector.broadcast %cst_10 : f32 to vector<8x16xf32>
    %13 = arith.mulf %12, %8 : vector<8x16xf32>
    %14 = arith.addf %11, %13 : vector<8x16xf32>
    %c0_11 = arith.constant 0 : index
    %c0_12 = arith.constant 0 : index
    %15 = vector.load %arg9[%c0_11, %c0_12] : memref<8x256xf32, #tpu.memory_space<vmem>>, vector<8x16xf32>
    tpu.vector_store %arg9[%c0_11, %c0_12], %14 {strides = array<i32>} : memref<8x256xf32, #tpu.memory_space<vmem>>, vector<8x16xf32>,
    %cst_13 = arith.constant 7.500000e-01 : f32
    %16 = vector.broadcast %cst_13 : f32 to vector<8x16xf32>
    %17 = arith.mulf %16, %8 : vector<8x16xf32>
    %18 = arith.extf %7 : vector<8x16xbf16> to vector<8x16xf32>
    %cst_14 = arith.constant 2.500000e-01 : f32
    %19 = vector.broadcast %cst_14 : f32 to vector<8x16xf32>
    %20 = arith.mulf %19, %18 : vector<8x16xf32>
    %21 = arith.addf %17, %20 : vector<8x16xf32>
    %c0_15 = arith.constant 0 : index
    %c16 = arith.constant 16 : index
    %22 = vector.load %arg9[%c0_15, %c16] : memref<8x256xf32, #tpu.memory_space<vmem>>, vector<8x16xf32>
    tpu.vector_store %arg9[%c0_15, %c16], %21 {strides = array<i32>} : memref<8x256xf32, #tpu.memory_space<vmem>>, vector<8x16xf32>,
    %23 = vector.extract_strided_slice %1 {offsets = [0, 0], sizes = [8, 16], strides = [1, 1]} : vector<8x128xbf16> to vector<8x16xbf16>
    %24 = vector.extract_strided_slice %1 {offsets = [0, 16], sizes = [8, 16], strides = [1, 1]} : vector<8x128xbf16> to vector<8x16xbf16>
    %25 = vector.extract_strided_slice %1 {offsets = [0, 32], sizes = [8, 16], strides = [1, 1]} : vector<8x128xbf16> to vector<8x16xbf16>
    %26 = arith.extf %24 : vector<8x16xbf16> to vector<8x16xf32>
    %27 = arith.extf %23 : vector<8x16xbf16> to vector<8x16xf32>
    %cst_16 = arith.constant 2.500000e-01 : f32
    %28 = vector.broadcast %cst_16 : f32 to vector<8x16xf32>
    %29 = arith.mulf %28, %27 : vector<8x16xf32>
    %cst_17 = arith.constant 7.500000e-01 : f32
    %30 = vector.broadcast %cst_17 : f32 to vector<8x16xf32>
    %31 = arith.mulf %30, %26 : vector<8x16xf32>
    %32 = arith.addf %29, %31 : vector<8x16xf32>
    %c0_18 = arith.constant 0 : index
    %c32 = arith.constant 32 : index
    %33 = vector.load %arg9[%c0_18, %c32] : memref<8x256xf32, #tpu.memory_space<vmem>>, vector<8x16xf32>
    tpu.vector_store %arg9[%c0_18, %c32], %32 {strides = array<i32>} : memref<8x256xf32, #tpu.memory_space<vmem>>, vector<8x16xf32>,
    %cst_19 = arith.constant 7.500000e-01 : f32
    %34 = vector.broadcast %cst_19 : f32 to vector<8x16xf32>
    %35 = arith.mulf %34, %26 : vector<8x16xf32>
    %36 = arith.extf %25 : vector<8x16xbf16> to vector<8x16xf32>
    %cst_20 = arith.constant 2.500000e-01 : f32
    %37 = vector.broadcast %cst_20 : f32 to vector<8x16xf32>
    %38 = arith.mulf %37, %36 : vector<8x16xf32>
    %39 = arith.addf %35, %38 : vector<8x16xf32>
    %c0_21 = arith.constant 0 : index
    %c48 = arith.constant 48 : index
    %40 = vector.load %arg9[%c0_21, %c48] : memref<8x256xf32, #tpu.memory_space<vmem>>, vector<8x16xf32>
    tpu.vector_store %arg9[%c0_21, %c48], %39 {strides = array<i32>} : memref<8x256xf32, #tpu.memory_space<vmem>>, vector<8x16xf32>,
    %41 = vector.extract_strided_slice %1 {offsets = [0, 16], sizes = [8, 16], strides = [1, 1]} : vector<8x128xbf16> to vector<8x16xbf16>
    %42 = vector.extract_strided_slice %1 {offsets = [0, 32], sizes = [8, 16], strides = [1, 1]} : vector<8x128xbf16> to vector<8x16xbf16>
    %43 = vector.extract_strided_slice %1 {offsets = [0, 48], sizes = [8, 16], strides = [1, 1]} : vector<8x128xbf16> to vector<8x16xbf16>
    %44 = arith.extf %42 : vector<8x16xbf16> to vector<8x16xf32>
    %45 = arith.extf %41 : vector<8x16xbf16> to vector<8x16xf32>
    %cst_22 = arith.constant 2.500000e-01 : f32
    %46 = vector.broadcast %cst_22 : f32 to vector<8x16xf32>
    %47 = arith.mulf %46, %45 : vector<8x16xf32>
    %cst_23 = arith.constant 7.500000e-01 : f32
    %48 = vector.broadcast %cst_23 : f32 to vector<8x16xf32>
    %49 = arith.mulf %48, %44 : vector<8x16xf32>
    %50 = arith.addf %47, %49 : vector<8x16xf32>
    %c0_24 = arith.constant 0 : index
    %c64 = arith.constant 64 : index
    %51 = vector.load %arg9[%c0_24, %c64] : memref<8x256xf32, #tpu.memory_space<vmem>>, vector<8x16xf32>
    tpu.vector_store %arg9[%c0_24, %c64], %50 {strides = array<i32>} : memref<8x256xf32, #tpu.memory_space<vmem>>, vector<8x16xf32>,
    %cst_25 = arith.constant 7.500000e-01 : f32
    %52 = vector.broadcast %cst_25 : f32 to vector<8x16xf32>
    %53 = arith.mulf %52, %44 : vector<8x16xf32>
    %54 = arith.extf %43 : vector<8x16xbf16> to vector<8x16xf32>
    %cst_26 = arith.constant 2.500000e-01 : f32
    %55 = vector.broadcast %cst_26 : f32 to vector<8x16xf32>
    %56 = arith.mulf %55, %54 : vector<8x16xf32>
    %57 = arith.addf %53, %56 : vector<8x16xf32>
    %c0_27 = arith.constant 0 : index
    %c80 = arith.constant 80 : index
    %58 = vector.load %arg9[%c0_27, %c80] : memref<8x256xf32, #tpu.memory_space<vmem>>, vector<8x16xf32>
    tpu.vector_store %arg9[%c0_27, %c80], %57 {strides = array<i32>} : memref<8x256xf32, #tpu.memory_space<vmem>>, vector<8x16xf32>,
    %59 = vector.extract_strided_slice %1 {offsets = [0, 32], sizes = [8, 16], strides = [1, 1]} : vector<8x128xbf16> to vector<8x16xbf16>
    %60 = vector.extract_strided_slice %1 {offsets = [0, 48], sizes = [8, 16], strides = [1, 1]} : vector<8x128xbf16> to vector<8x16xbf16>
    %61 = vector.extract_strided_slice %1 {offsets = [0, 64], sizes = [8, 16], strides = [1, 1]} : vector<8x128xbf16> to vector<8x16xbf16>
    %62 = arith.extf %60 : vector<8x16xbf16> to vector<8x16xf32>
    %63 = arith.extf %59 : vector<8x16xbf16> to vector<8x16xf32>
    %cst_28 = arith.constant 2.500000e-01 : f32
    %64 = vector.broadcast %cst_28 : f32 to vector<8x16xf32>
    %65 = arith.mulf %64, %63 : vector<8x16xf32>
    %cst_29 = arith.constant 7.500000e-01 : f32
    %66 = vector.broadcast %cst_29 : f32 to vector<8x16xf32>
    %67 = arith.mulf %66, %62 : vector<8x16xf32>
    %68 = arith.addf %65, %67 : vector<8x16xf32>
    %c0_30 = arith.constant 0 : index
    %c96 = arith.constant 96 : index
    %69 = vector.load %arg9[%c0_30, %c96] : memref<8x256xf32, #tpu.memory_space<vmem>>, vector<8x16xf32>
    tpu.vector_store %arg9[%c0_30, %c96], %68 {strides = array<i32>} : memref<8x256xf32, #tpu.memory_space<vmem>>, vector<8x16xf32>,
    %cst_31 = arith.constant 7.500000e-01 : f32
    %70 = vector.broadcast %cst_31 : f32 to vector<8x16xf32>
    %71 = arith.mulf %70, %62 : vector<8x16xf32>
    %72 = arith.extf %61 : vector<8x16xbf16> to vector<8x16xf32>
    %cst_32 = arith.constant 2.500000e-01 : f32
    %73 = vector.broadcast %cst_32 : f32 to vector<8x16xf32>
    %74 = arith.mulf %73, %72 : vector<8x16xf32>
    %75 = arith.addf %71, %74 : vector<8x16xf32>
    %c0_33 = arith.constant 0 : index
    %c112 = arith.constant 112 : index
    %76 = vector.load %arg9[%c0_33, %c112] : memref<8x256xf32, #tpu.memory_space<vmem>>, vector<8x16xf32>
    tpu.vector_store %arg9[%c0_33, %c112], %75 {strides = array<i32>} : memref<8x256xf32, #tpu.memory_space<vmem>>, vector<8x16xf32>,
    %77 = vector.extract_strided_slice %1 {offsets = [0, 48], sizes = [8, 16], strides = [1, 1]} : vector<8x128xbf16> to vector<8x16xbf16>
    %78 = vector.extract_strided_slice %1 {offsets = [0, 64], sizes = [8, 16], strides = [1, 1]} : vector<8x128xbf16> to vector<8x16xbf16>
    %79 = vector.extract_strided_slice %1 {offsets = [0, 80], sizes = [8, 16], strides = [1, 1]} : vector<8x128xbf16> to vector<8x16xbf16>
    %80 = arith.extf %78 : vector<8x16xbf16> to vector<8x16xf32>
    %81 = arith.extf %77 : vector<8x16xbf16> to vector<8x16xf32>
    %cst_34 = arith.constant 2.500000e-01 : f32
    %82 = vector.broadcast %cst_34 : f32 to vector<8x16xf32>
    %83 = arith.mulf %82, %81 : vector<8x16xf32>
    %cst_35 = arith.constant 7.500000e-01 : f32
    %84 = vector.broadcast %cst_35 : f32 to vector<8x16xf32>
    %85 = arith.mulf %84, %80 : vector<8x16xf32>
    %86 = arith.addf %83, %85 : vector<8x16xf32>
    %c0_36 = arith.constant 0 : index
    %c128 = arith.constant 128 : index
    %87 = vector.load %arg9[%c0_36, %c128] : memref<8x256xf32, #tpu.memory_space<vmem>>, vector<8x16xf32>
    tpu.vector_store %arg9[%c0_36, %c128], %86 {strides = array<i32>} : memref<8x256xf32, #tpu.memory_space<vmem>>, vector<8x16xf32>,
    %cst_37 = arith.constant 7.500000e-01 : f32
    %88 = vector.broadcast %cst_37 : f32 to vector<8x16xf32>
    %89 = arith.mulf %88, %80 : vector<8x16xf32>
    %90 = arith.extf %79 : vector<8x16xbf16> to vector<8x16xf32>
    %cst_38 = arith.constant 2.500000e-01 : f32
    %91 = vector.broadcast %cst_38 : f32 to vector<8x16xf32>
    %92 = arith.mulf %91, %90 : vector<8x16xf32>
    %93 = arith.addf %89, %92 : vector<8x16xf32>
    %c0_39 = arith.constant 0 : index
    %c144 = arith.constant 144 : index
    %94 = vector.load %arg9[%c0_39, %c144] : memref<8x256xf32, #tpu.memory_space<vmem>>, vector<8x16xf32>
    tpu.vector_store %arg9[%c0_39, %c144], %93 {strides = array<i32>} : memref<8x256xf32, #tpu.memory_space<vmem>>, vector<8x16xf32>,
    %95 = vector.extract_strided_slice %1 {offsets = [0, 64], sizes = [8, 16], strides = [1, 1]} : vector<8x128xbf16> to vector<8x16xbf16>
    %96 = vector.extract_strided_slice %1 {offsets = [0, 80], sizes = [8, 16], strides = [1, 1]} : vector<8x128xbf16> to vector<8x16xbf16>
    %97 = vector.extract_strided_slice %1 {offsets = [0, 96], sizes = [8, 16], strides = [1, 1]} : vector<8x128xbf16> to vector<8x16xbf16>
    %98 = arith.extf %96 : vector<8x16xbf16> to vector<8x16xf32>
    %99 = arith.extf %95 : vector<8x16xbf16> to vector<8x16xf32>
    %cst_40 = arith.constant 2.500000e-01 : f32
    %100 = vector.broadcast %cst_40 : f32 to vector<8x16xf32>
    %101 = arith.mulf %100, %99 : vector<8x16xf32>
    %cst_41 = arith.constant 7.500000e-01 : f32
    %102 = vector.broadcast %cst_41 : f32 to vector<8x16xf32>
    %103 = arith.mulf %102, %98 : vector<8x16xf32>
    %104 = arith.addf %101, %103 : vector<8x16xf32>
    %c0_42 = arith.constant 0 : index
    %c160 = arith.constant 160 : index
    %105 = vector.load %arg9[%c0_42, %c160] : memref<8x256xf32, #tpu.memory_space<vmem>>, vector<8x16xf32>
    tpu.vector_store %arg9[%c0_42, %c160], %104 {strides = array<i32>} : memref<8x256xf32, #tpu.memory_space<vmem>>, vector<8x16xf32>,
    %cst_43 = arith.constant 7.500000e-01 : f32
    %106 = vector.broadcast %cst_43 : f32 to vector<8x16xf32>
    %107 = arith.mulf %106, %98 : vector<8x16xf32>
    %108 = arith.extf %97 : vector<8x16xbf16> to vector<8x16xf32>
    %cst_44 = arith.constant 2.500000e-01 : f32
    %109 = vector.broadcast %cst_44 : f32 to vector<8x16xf32>
    %110 = arith.mulf %109, %108 : vector<8x16xf32>
    %111 = arith.addf %107, %110 : vector<8x16xf32>
    %c0_45 = arith.constant 0 : index
    %c176 = arith.constant 176 : index
    %112 = vector.load %arg9[%c0_45, %c176] : memref<8x256xf32, #tpu.memory_space<vmem>>, vector<8x16xf32>
    tpu.vector_store %arg9[%c0_45, %c176], %111 {strides = array<i32>} : memref<8x256xf32, #tpu.memory_space<vmem>>, vector<8x16xf32>,
    %113 = vector.extract_strided_slice %1 {offsets = [0, 80], sizes = [8, 16], strides = [1, 1]} : vector<8x128xbf16> to vector<8x16xbf16>
    %114 = vector.extract_strided_slice %1 {offsets = [0, 96], sizes = [8, 16], strides = [1, 1]} : vector<8x128xbf16> to vector<8x16xbf16>
    %115 = vector.extract_strided_slice %1 {offsets = [0, 112], sizes = [8, 16], strides = [1, 1]} : vector<8x128xbf16> to vector<8x16xbf16>
    %116 = arith.extf %114 : vector<8x16xbf16> to vector<8x16xf32>
    %117 = arith.extf %113 : vector<8x16xbf16> to vector<8x16xf32>
    %cst_46 = arith.constant 2.500000e-01 : f32
    %118 = vector.broadcast %cst_46 : f32 to vector<8x16xf32>
    %119 = arith.mulf %118, %117 : vector<8x16xf32>
    %cst_47 = arith.constant 7.500000e-01 : f32
    %120 = vector.broadcast %cst_47 : f32 to vector<8x16xf32>
    %121 = arith.mulf %120, %116 : vector<8x16xf32>
    %122 = arith.addf %119, %121 : vector<8x16xf32>
    %c0_48 = arith.constant 0 : index
    %c192 = arith.constant 192 : index
    %123 = vector.load %arg9[%c0_48, %c192] : memref<8x256xf32, #tpu.memory_space<vmem>>, vector<8x16xf32>
    tpu.vector_store %arg9[%c0_48, %c192], %122 {strides = array<i32>} : memref<8x256xf32, #tpu.memory_space<vmem>>, vector<8x16xf32>,
    %cst_49 = arith.constant 7.500000e-01 : f32
    %124 = vector.broadcast %cst_49 : f32 to vector<8x16xf32>
    %125 = arith.mulf %124, %116 : vector<8x16xf32>
    %126 = arith.extf %115 : vector<8x16xbf16> to vector<8x16xf32>
    %cst_50 = arith.constant 2.500000e-01 : f32
    %127 = vector.broadcast %cst_50 : f32 to vector<8x16xf32>
    %128 = arith.mulf %127, %126 : vector<8x16xf32>
    %129 = arith.addf %125, %128 : vector<8x16xf32>
    %c0_51 = arith.constant 0 : index
    %c208 = arith.constant 208 : index
    %130 = vector.load %arg9[%c0_51, %c208] : memref<8x256xf32, #tpu.memory_space<vmem>>, vector<8x16xf32>
    tpu.vector_store %arg9[%c0_51, %c208], %129 {strides = array<i32>} : memref<8x256xf32, #tpu.memory_space<vmem>>, vector<8x16xf32>,
    %131 = vector.extract_strided_slice %1 {offsets = [0, 96], sizes = [8, 16], strides = [1, 1]} : vector<8x128xbf16> to vector<8x16xbf16>
    %132 = vector.extract_strided_slice %1 {offsets = [0, 112], sizes = [8, 16], strides = [1, 1]} : vector<8x128xbf16> to vector<8x16xbf16>
    %133 = arith.extf %132 : vector<8x16xbf16> to vector<8x16xf32>
    %134 = arith.extf %131 : vector<8x16xbf16> to vector<8x16xf32>
    %cst_52 = arith.constant 2.500000e-01 : f32
    %135 = vector.broadcast %cst_52 : f32 to vector<8x16xf32>
    %136 = arith.mulf %135, %134 : vector<8x16xf32>
    %cst_53 = arith.constant 7.500000e-01 : f32
    %137 = vector.broadcast %cst_53 : f32 to vector<8x16xf32>
    %138 = arith.mulf %137, %133 : vector<8x16xf32>
    %139 = arith.addf %136, %138 : vector<8x16xf32>
    %c0_54 = arith.constant 0 : index
    %c224 = arith.constant 224 : index
    %140 = vector.load %arg9[%c0_54, %c224] : memref<8x256xf32, #tpu.memory_space<vmem>>, vector<8x16xf32>
    tpu.vector_store %arg9[%c0_54, %c224], %139 {strides = array<i32>} : memref<8x256xf32, #tpu.memory_space<vmem>>, vector<8x16xf32>,
    %cst_55 = arith.constant 7.500000e-01 : f32
    %141 = vector.broadcast %cst_55 : f32 to vector<8x16xf32>
    %142 = arith.mulf %141, %133 : vector<8x16xf32>
    %143 = arith.extf %5 : vector<8x16xbf16> to vector<8x16xf32>
    %cst_56 = arith.constant 2.500000e-01 : f32
    %144 = vector.broadcast %cst_56 : f32 to vector<8x16xf32>
    %145 = arith.mulf %144, %143 : vector<8x16xf32>
    %146 = arith.addf %142, %145 : vector<8x16xf32>
    %c0_57 = arith.constant 0 : index
    %c240 = arith.constant 240 : index
    %147 = vector.load %arg9[%c0_57, %c240] : memref<8x256xf32, #tpu.memory_space<vmem>>, vector<8x16xf32>
    tpu.vector_store %arg9[%c0_57, %c240], %146 {strides = array<i32>} : memref<8x256xf32, #tpu.memory_space<vmem>>, vector<8x16xf32>,
    %c0_58 = arith.constant 0 : index
    %c0_59 = arith.constant 0 : index
    %c0_60 = arith.constant 0 : index
    %148 = vector.load %arg2[%c0_58, %c0_59, %c0_60] : memref<1x4x256xbf16, #tpu.memory_space<vmem>>, vector<1x4x256xbf16>
    %149 = vector.shape_cast %148 : vector<1x4x256xbf16> to vector<4x256xbf16>
    %c0_61 = arith.constant 0 : index
    %c0_62 = arith.constant 0 : index
    %150 = vector.load %arg9[%c0_61, %c0_62] : memref<8x256xf32, #tpu.memory_space<vmem>>, vector<8x256xf32>
    %c0_63 = arith.constant 0 : index
    %c0_64 = arith.constant 0 : index
    %151 = vector.load %arg6[%c0_63, %c0_64] : memref<8x4xbf16, #tpu.memory_space<vmem>>, vector<8x4xbf16>
    %cst_65 = arith.constant dense<0.000000e+00> : vector<8x256xf32>
    %152 = tpu.matmul %151, %149, %cst_65 {dimension_numbers = #tpu.dot_dimension_numbers<[1], [0], [0], [1], [0, 0, 1, 1], [], []>} : vector<8x4xbf16>, vector<4x256xbf16>, vector<8x256xf32> -> vector<8x256xf32>
    %153 = arith.addf %150, %152 : vector<8x256xf32>
    %cst_66 = arith.constant 0.000000e+00 : f32
    %154 = vector.broadcast %cst_66 : f32 to vector<8x256xf32>
    %155 = arith.maximumf %153, %154 : vector<8x256xf32>
    %c0_67 = arith.constant 0 : index
    %c0_68 = arith.constant 0 : index
    %156 = vector.load %arg7[%c0_67, %c0_68] : memref<1x8xf32, #tpu.memory_space<vmem>>, vector<1x8xf32>
    %cst_69 = arith.constant dense<0.000000e+00> : vector<1x256xf32>
    %157 = tpu.matmul %156, %155, %cst_69 {dimension_numbers = #tpu.dot_dimension_numbers<[1], [0], [0], [1], [0, 0, 1, 1], [], []>} : vector<1x8xf32>, vector<8x256xf32>, vector<1x256xf32> -> vector<1x256xf32>
    %158 = arith.negf %157 : vector<1x256xf32>
    %159 = math.exp %158 : vector<1x256xf32>
    %cst_70 = arith.constant 1.000000e+00 : f32
    %160 = vector.broadcast %cst_70 : f32 to vector<1x256xf32>
    %161 = arith.addf %160, %159 : vector<1x256xf32>
    %162 = arith.divf %160, %161 : vector<1x256xf32>
    %163 = arith.extf %149 : vector<4x256xbf16> to vector<4x256xf32>
    %164 = vector.broadcast %162 : vector<1x256xf32> to vector<4x256xf32>
    %165 = arith.mulf %163, %164 : vector<4x256xf32>
    %c0_71 = arith.constant 0 : index
    %c0_72 = arith.constant 0 : index
    %c0_73 = arith.constant 0 : index
    %166 = vector.load %arg8[%c0_71, %c0_72, %c0_73] : memref<1x4x256xf32, #tpu.memory_space<vmem>>, vector<1x4x256xf32>
    %167 = vector.shape_cast %166 : vector<1x4x256xf32> to vector<4x256xf32>
    %168 = vector.shape_cast %165 : vector<4x256xf32> to vector<1x4x256xf32>
    tpu.vector_store %arg8[%c0_71, %c0_72, %c0_73], %168 {strides = array<i32>} : memref<1x4x256xf32, #tpu.memory_space<vmem>>, vector<1x4x256xf32>,
    return
  }
  func.func @transform_0(%arg0: i32, %arg1: i32) -> (i32, i32, i32) {
    %c0_i32 = arith.constant 0 : i32
    %c0_i32_0 = arith.constant 0 : i32
    return %arg0, %c0_i32, %arg1 : i32, i32, i32
  }
  func.func @transform_1(%arg0: i32, %arg1: i32) -> (i32, i32, i32) {
    %c0_i32 = arith.constant 0 : i32
    %c0_i32_0 = arith.constant 0 : i32
    return %arg0, %c0_i32, %arg1 : i32, i32, i32
  }
  func.func @transform_2(%arg0: i32, %arg1: i32) -> (i32, i32, i32, i32) {
    %c0_i32 = arith.constant 0 : i32
    %c0_i32_0 = arith.constant 0 : i32
    %c0_i32_1 = arith.constant 0 : i32
    return %arg0, %arg1, %c0_i32, %c0_i32_0 : i32, i32, i32, i32
  }
  func.func @transform_3(%arg0: i32, %arg1: i32) -> (i32, i32, i32, i32) {
    %c0_i32 = arith.constant 0 : i32
    %c0_i32_0 = arith.constant 0 : i32
    %c0_i32_1 = arith.constant 0 : i32
    return %arg0, %arg1, %c0_i32, %c0_i32_0 : i32, i32, i32, i32
  }
  func.func @transform_4(%arg0: i32, %arg1: i32) -> (i32, i32) {
    %c0_i32 = arith.constant 0 : i32
    %c0_i32_0 = arith.constant 0 : i32
    %c0_i32_1 = arith.constant 0 : i32
    return %c0_i32, %c0_i32_0 : i32, i32
  }
  func.func @transform_5(%arg0: i32, %arg1: i32) -> (i32, i32) {
    %c0_i32 = arith.constant 0 : i32
    %c0_i32_0 = arith.constant 0 : i32
    %c0_i32_1 = arith.constant 0 : i32
    return %c0_i32, %c0_i32_0 : i32, i32
  }
  func.func @transform_6(%arg0: i32, %arg1: i32) -> (i32, i32, i32) {
    %c0_i32 = arith.constant 0 : i32
    %c0_i32_0 = arith.constant 0 : i32
    return %arg0, %c0_i32, %arg1 : i32, i32, i32
  }
}

</mosaic_0001>

<llo_original>
// kernel: _attention_gates_impl.1
$region0: #{_attention_gates_impl.1}
  #allocation0 [shape = 'u32[]', space=smem, size = 0x4, offset = 0x4, fixed_abs, tag = 'smem constant byte address 0x4 - core index']
  #allocation1 [shape = 'u32[72,128]{1,0:T(1,128)}', space=vmem, size = 0x9000, scoped, tag = 'internal scratch']
  #allocation2 [shape = 'f32[8,256]{1,0:T(8,128)}', space=vmem, size = 0x2000, scoped, tag = 'scratch operand']
  %s0 = inlined_call_operand.vmem [shape: bf16[2,4,256], index: 0, kind: input, shape index: {}]
  %s1 = inlined_call_operand.vmem [shape: bf16[2,8,128], index: 1, kind: input, shape index: {}]
  %s2 = inlined_call_operand.vmem [shape: bf16[2,1,8,16], index: 2, kind: input, shape index: {}]
  %s3 = inlined_call_operand.vmem [shape: bf16[2,1,8,16], index: 3, kind: input, shape index: {}]
  %s4 = inlined_call_operand.vmem [shape: bf16[8,4], index: 4, kind: input, shape index: {}]
  %s5 = inlined_call_operand.vmem [shape: f32[1,8], index: 5, kind: input, shape index: {}]
  %s6 = inlined_call_operand.vmem [shape: f32[2,4,256], index: 6, kind: output, shape index: {}]
  %s7 = sld [smem:[#allocation0]]
  $region57: #{_attention_gates_impl.1} parent=0
    _
  %s9 = ssub.s32 1, %s7
  %s10 = scalar_select 0, %s9, %s7
  loop: start=0, step=1, limit=4
  $region2: #{_attention_gates_impl.1} parent=0 // loop_pre_header
    _
  $region3: #{_attention_gates_impl.1} parent=0 // loop_header
    %s12 = sphi 0, %s16
    %p13 = scmp.ge.s32.totalorder %s12, 4
    %s19 = sphi 0, %s31
    %s20 = sphi 0, %s27
    %s21 = sphi 0, %s19
    %s22 = sphi 0, %s20
    %s23 = sphi 0, %s21
    %s24 = sphi 0, %s22
    %s36 = sphi 0, %s38
    %s39 = sphi 0, %s36
    %s40 = sphi 0, %s39
    %s56 = sphi 0, %s40
    %s64 = sphi 0, %s66
    %s67 = sphi 0, %s64
    %s68 = sphi 0, %s67
    %s84 = sphi 0, %s68
    %s92 = sphi 0, %s94
    %s95 = sphi 0, %s92
    %s96 = sphi 0, %s95
    %s112 = sphi 0, %s96
    %s120 = sphi 0, %s122
    %s123 = sphi 0, %s120
    %s124 = sphi 0, %s123
    %s140 = sphi 0, %s124
    %s144 = sphi 0, %s144
    %s146 = sphi 0, %s144
    %s147 = sphi 0, %s146
    %s161 = sphi 0, %s147
    %s165 = sphi 0, %s165
    %s167 = sphi 0, %s165
    %s168 = sphi 0, %s167
    %s182 = sphi 0, %s168
    %s190 = sphi 0, %s192
    %s193 = sphi 0, %s190
    %s194 = sphi 0, %s193
    %s210 = sphi 0, %s194
  $region4: #{_attention_gates_impl.1} parent=0 // loop_header_branch
    %15 = sbr.rel (%p13) target = $region8
  $region5: #{_attention_gates_impl.1} parent=0 // loop_body
    %s17 = ssub.s32 %s12, 1
    %s18 = ssub.s32 %s12, 2
    %s25 = sadd.s32 1, %s20
    %p26 = scmp.ge.s32.totalorder %s25, 1
    %s27 = scalar_select %p26, 0, %s25
    %s28 = sadd.s32 1, %s19
    %s29 = scalar_select %p26, %s28, %s19
    %p30 = scmp.ge.s32.totalorder %s29, 2
    %s31 = scalar_select %p30, 0, %s29
    %s32 = ssub.s32 %s19, %s31
    %s33 = ssub.s32 %s20, %s27
    %s34 = sor.u32 %s32, %s33
    %p35 = scmp.eq.s32.totalorder %s34, 0
    %s37 = sadd.s32 %s36, 1
    %s38 = scalar_select %p35, %s36, %s37
    %p41 = pneg %p35
    %p42 = scmp.eq.s32.totalorder %s12, 1
    %p43 = por %p41, %p42
    %p44 = scmp.ne.s32.totalorder %s36, %s39
    %p45 = scmp.eq.s32.totalorder %s12, 0
    %p46 = por %p44, %p45
    %p47 = scmp.ne.s32.totalorder %s36, %s39
    %p48 = scmp.eq.s32.totalorder %s17, 1
    %p49 = por %p47, %p48
    %p50 = scmp.ne.s32.totalorder %s39, %s40
    %p51 = scmp.eq.s32.totalorder %s17, 0
    %p52 = por %p50, %p51
    %p53 = scmp.ne.s32.totalorder %s39, %s40
    %p54 = scmp.eq.s32.totalorder %s18, 1
    %p55 = por %p53, %p54
    %p57 = scmp.ne.s32.totalorder %s40, %s56
    %p58 = scmp.eq.s32.totalorder %s18, 0
    %p59 = por %p57, %p58
    %s60 = ssub.s32 %s19, %s31
    %s61 = ssub.s32 %s20, %s27
    %s62 = sor.u32 %s60, %s61
    %p63 = scmp.eq.s32.totalorder %s62, 0
    %s65 = sadd.s32 %s64, 1
    %s66 = scalar_select %p63, %s64, %s65
    %p69 = pneg %p63
    %p70 = scmp.eq.s32.totalorder %s12, 1
    %p71 = por %p69, %p70
    %p72 = scmp.ne.s32.totalorder %s64, %s67
    %p73 = scmp.eq.s32.totalorder %s12, 0
    %p74 = por %p72, %p73
    %p75 = scmp.ne.s32.totalorder %s64, %s67
    %p76 = scmp.eq.s32.totalorder %s17, 1
    %p77 = por %p75, %p76
    %p78 = scmp.ne.s32.totalorder %s67, %s68
    %p79 = scmp.eq.s32.totalorder %s17, 0
    %p80 = por %p78, %p79
    %p81 = scmp.ne.s32.totalorder %s67, %s68
    %p82 = scmp.eq.s32.totalorder %s18, 1
    %p83 = por %p81, %p82
    %p85 = scmp.ne.s32.totalorder %s68, %s84
    %p86 = scmp.eq.s32.totalorder %s18, 0
    %p87 = por %p85, %p86
    %s88 = ssub.s32 %s19, %s31
    %s89 = ssub.s32 %s20, %s27
    %s90 = sor.u32 %s88, %s89
    %p91 = scmp.eq.s32.totalorder %s90, 0
    %s93 = sadd.s32 %s92, 1
    %s94 = scalar_select %p91, %s92, %s93
    %p97 = pneg %p91
    %p98 = scmp.eq.s32.totalorder %s12, 1
    %p99 = por %p97, %p98
    %p100 = scmp.ne.s32.totalorder %s92, %s95
    %p101 = scmp.eq.s32.totalorder %s12, 0
    %p102 = por %p100, %p101
    %p103 = scmp.ne.s32.totalorder %s92, %s95
    %p104 = scmp.eq.s32.totalorder %s17, 1
    %p105 = por %p103, %p104
    %p106 = scmp.ne.s32.totalorder %s95, %s96
    %p107 = scmp.eq.s32.totalorder %s17, 0
    %p108 = por %p106, %p107
    %p109 = scmp.ne.s32.totalorder %s95, %s96
    %p110 = scmp.eq.s32.totalorder %s18, 1
    %p111 = por %p109, %p110
    %p113 = scmp.ne.s32.totalorder %s96, %s112
    %p114 = scmp.eq.s32.totalorder %s18, 0
    %p115 = por %p113, %p114
    %s116 = ssub.s32 %s19, %s31
    %s117 = ssub.s32 %s20, %s27
    %s118 = sor.u32 %s116, %s117
    %p119 = scmp.eq.s32.totalorder %s118, 0
    %s121 = sadd.s32 %s120, 1
    %s122 = scalar_select %p119, %s120, %s121
    %p125 = pneg %p119
    %p126 = scmp.eq.s32.totalorder %s12, 1
    %p127 = por %p125, %p126
    %p128 = scmp.ne.s32.totalorder %s120, %s123
    %p129 = scmp.eq.s32.totalorder %s12, 0
    %p130 = por %p128, %p129
    %p131 = scmp.ne.s32.totalorder %s120, %s123
    %p132 = scmp.eq.s32.totalorder %s17, 1
    %p133 = por %p131, %p132
    %p134 = scmp.ne.s32.totalorder %s123, %s124
    %p135 = scmp.eq.s32.totalorder %s17, 0
    %p136 = por %p134, %p135
    %p137 = scmp.ne.s32.totalorder %s123, %s124
    %p138 = scmp.eq.s32.totalorder %s18, 1
    %p139 = por %p137, %p138
    %p141 = scmp.ne.s32.totalorder %s124, %s140
    %p142 = scmp.eq.s32.totalorder %s18, 0
    %p143 = por %p141, %p142
    %s145 = sadd.s32 %s144, 1
    %p148 = scmp.eq.s32.totalorder %s12, 1
    %p149 = scmp.ne.s32.totalorder %s144, %s146
    %p150 = scmp.eq.s32.totalorder %s12, 0
    %p151 = por %p149, %p150
    %p152 = scmp.ne.s32.totalorder %s144, %s146
    %p153 = scmp.eq.s32.totalorder %s17, 1
    %p154 = por %p152, %p153
    %p155 = scmp.ne.s32.totalorder %s146, %s147
    %p156 = scmp.eq.s32.totalorder %s17, 0
    %p157 = por %p155, %p156
    %p158 = scmp.ne.s32.totalorder %s146, %s147
    %p159 = scmp.eq.s32.totalorder %s18, 1
    %p160 = por %p158, %p159
    %p162 = scmp.ne.s32.totalorder %s147, %s161
    %p163 = scmp.eq.s32.totalorder %s18, 0
    %p164 = por %p162, %p163
    %s166 = sadd.s32 %s165, 1
    %p169 = scmp.eq.s32.totalorder %s12, 1
    %p170 = scmp.ne.s32.totalorder %s165, %s167
    %p171 = scmp.eq.s32.totalorder %s12, 0
    %p172 = por %p170, %p171
    %p173 = scmp.ne.s32.totalorder %s165, %s167
    %p174 = scmp.eq.s32.totalorder %s17, 1
    %p175 = por %p173, %p174
    %p176 = scmp.ne.s32.totalorder %s167, %s168
    %p177 = scmp.eq.s32.totalorder %s17, 0
    %p178 = por %p176, %p177
    %p179 = scmp.ne.s32.totalorder %s167, %s168
    %p180 = scmp.eq.s32.totalorder %s18, 1
    %p181 = por %p179, %p180
    %p183 = scmp.ne.s32.totalorder %s168, %s182
    %p184 = scmp.eq.s32.totalorder %s18, 0
    %p185 = por %p183, %p184
    %s186 = ssub.s32 %s19, %s31
    %s187 = ssub.s32 %s20, %s27
    %s188 = sor.u32 %s186, %s187
    %p189 = scmp.eq.s32.totalorder %s188, 0
    %s191 = sadd.s32 %s190, 1
    %s192 = scalar_select %p189, %s190, %s191
    %p195 = pneg %p189
    %p196 = scmp.eq.s32.totalorder %s12, 1
    %p197 = por %p195, %p196
    %p198 = scmp.ne.s32.totalorder %s190, %s193
    %p199 = scmp.eq.s32.totalorder %s12, 0
    %p200 = por %p198, %p199
    %p201 = scmp.ne.s32.totalorder %s190, %s193
    %p202 = scmp.eq.s32.totalorder %s17, 1
    %p203 = por %p201, %p202
    %p204 = scmp.ne.s32.totalorder %s193, %s194
    %p205 = scmp.eq.s32.totalorder %s17, 0
    %p206 = por %p204, %p205
    %p207 = scmp.ne.s32.totalorder %s193, %s194
    %p208 = scmp.eq.s32.totalorder %s18, 1
    %p209 = por %p207, %p208
    %p211 = scmp.ne.s32.totalorder %s194, %s210
    %p212 = scmp.eq.s32.totalorder %s18, 0
    %p213 = por %p211, %p212
    %p214 = scmp.le.s32.totalorder 1, %s12
    %p215 = scmp.lt.s32.totalorder %s12, 3
    %p216 = pnand %p214, %p215
    %p217 = pneg %p216
    // Predicated region
    $region9: #{_attention_gates_impl.1} parent=5 // pred_check
      _
    $region10: #{_attention_gates_impl.1} parent=5 // pred_check_branch
      %219 = sbr.rel (%p216) target = $region12
    $region11: #{_attention_gates_impl.1} parent=5 // pred_region
      %s220 = ssub.s32 %s12, 1
      // Predicated region
      $region13: #{_attention_gates_impl.1} parent=11 // pred_check
        %p221 = pneg %p157
      $region14: #{_attention_gates_impl.1} parent=11 // pred_check_branch
        %223 = sbr.rel (%p221) target = $region16
      $region15: #{_attention_gates_impl.1} parent=11 // pred_region
        _
      $region16: #{_attention_gates_impl.1} parent=11 // pred_fallthru
        _
      // Predicated region
      $region17: #{_attention_gates_impl.1} parent=11 // pred_check
        %p224 = pneg %p178
      $region18: #{_attention_gates_impl.1} parent=11 // pred_check_branch
        %226 = sbr.rel (%p224) target = $region20
      $region19: #{_attention_gates_impl.1} parent=11 // pred_region
        _
      $region20: #{_attention_gates_impl.1} parent=11 // pred_fallthru
        _
    $region12: #{_attention_gates_impl.1} parent=5 // pred_fallthru
      _
    %p227 = scmp.lt.s32.totalorder %s12, 2
    // Predicated region
    $region21: #{_attention_gates_impl.1} parent=5 // pred_check
      %p228 = pneg %p227
    $region22: #{_attention_gates_impl.1} parent=5 // pred_check_branch
      %230 = sbr.rel (%p228) target = $region24
    $region23: #{_attention_gates_impl.1} parent=5 // pred_region
      // Predicated region
      $region25: #{_attention_gates_impl.1} parent=23 // pred_check
        %p231 = pneg %p46
      $region26: #{_attention_gates_impl.1} parent=23 // pred_check_branch
        %233 = sbr.rel (%p231) target = $region28
      $region27: #{_attention_gates_impl.1} parent=23 // pred_region
        %s234 = smul.u32 2, %s20
        %p235 = scmp.lt.s32.totalorder %s19, 1
        %s236 = scalar_select %p235, %s19, 1
        %p237 = scmp.lt.s32.totalorder %s234, 1
        %s238 = scalar_select %p237, %s234, 1
        %s239 = smul.addr %s236, 2
        %s240 = sadd.s32 %s238, %s239
        %s241 = smul.addr %s240, 2
        %s242 = scalar_lea.vmem %s0, %s241
        %s243 = smul.u32 2, %s20
      $region28: #{_attention_gates_impl.1} parent=23 // pred_fallthru
        _
      // Predicated region
      $region29: #{_attention_gates_impl.1} parent=23 // pred_check
        %p244 = pneg %p74
      $region30: #{_attention_gates_impl.1} parent=23 // pred_check_branch
        %246 = sbr.rel (%p244) target = $region32
      $region31: #{_attention_gates_impl.1} parent=23 // pred_region
        %p247 = scmp.lt.s32.totalorder %s19, 1
        %s248 = scalar_select %p247, %s19, 1
        %p249 = scmp.lt.s32.totalorder %s20, 0
        %s250 = scalar_select %p249, %s20, 0
        %s251 = sadd.s32 %s250, %s248
        %s252 = smul.addr %s251, 4
        %s253 = scalar_lea.vmem %s1, %s252
      $region32: #{_attention_gates_impl.1} parent=23 // pred_fallthru
        _
      // Predicated region
      $region33: #{_attention_gates_impl.1} parent=23 // pred_check
        %p254 = pneg %p102
      $region34: #{_attention_gates_impl.1} parent=23 // pred_check_branch
        %256 = sbr.rel (%p254) target = $region36
      $region35: #{_attention_gates_impl.1} parent=23 // pred_region
        %p257 = scmp.lt.s32.totalorder %s19, 1
        %s258 = scalar_select %p257, %s19, 1
        %p259 = scmp.lt.s32.totalorder %s20, 0
        %s260 = scalar_select %p259, %s20, 0
        %s261 = sadd.s32 %s260, %s258
        %s262 = smul.addr %s261, 4
        %s263 = scalar_lea.vmem %s2, %s262
      $region36: #{_attention_gates_impl.1} parent=23 // pred_fallthru
        _
      // Predicated region
      $region37: #{_attention_gates_impl.1} parent=23 // pred_check
        %p264 = pneg %p130
      $region38: #{_attention_gates_impl.1} parent=23 // pred_check_branch
        %266 = sbr.rel (%p264) target = $region40
      $region39: #{_attention_gates_impl.1} parent=23 // pred_region
        %p267 = scmp.lt.s32.totalorder %s19, 1
        %s268 = scalar_select %p267, %s19, 1
        %p269 = scmp.lt.s32.totalorder %s20, 0
        %s270 = scalar_select %p269, %s20, 0
        %s271 = sadd.s32 %s270, %s268
        %s272 = smul.addr %s271, 4
        %s273 = scalar_lea.vmem %s3, %s272
      $region40: #{_attention_gates_impl.1} parent=23 // pred_fallthru
        _
    $region24: #{_attention_gates_impl.1} parent=5 // pred_fallthru
      _
    %p274 = scmp.le.s32.totalorder 1, %s12
    %p275 = scmp.lt.s32.totalorder %s12, 3
    %p276 = pnand %p274, %p275
    %p277 = pneg %p276
    // Predicated region
    $region41: #{_attention_gates_impl.1} parent=5 // pred_check
      _
    $region42: #{_attention_gates_impl.1} parent=5 // pred_check_branch
      %279 = sbr.rel (%p276) target = $region44
    $region43: #{_attention_gates_impl.1} parent=5 // pred_region
      %s280 = ssub.s32 %s12, 1
      %s281 = smul.u32 2, %s22
      %p282 = scmp.lt.s32.totalorder %s21, 1
      %s283 = scalar_select %p282, %s21, 1
      %p284 = scmp.lt.s32.totalorder %s281, 1
      %s285 = scalar_select %p284, %s281, 1
      %s286 = smul.addr %s283, 2
      %s287 = sadd.s32 %s285, %s286
      %s288 = smul.addr %s287, 2
      %s289 = scalar_lea.vmem %s0, %s288
      %p290 = pneg %p52
      %p291 = pneg %p49
      %p292 = scmp.lt.s32.totalorder %s21, 1
      %s293 = scalar_select %p292, %s21, 1
      %p294 = scmp.lt.s32.totalorder %s22, 0
      %s295 = scalar_select %p294, %s22, 0
      %s296 = sadd.s32 %s295, %s293
      %s297 = smul.addr %s296, 4
      %s298 = scalar_lea.vmem %s1, %s297
      %p299 = pneg %p80
      %p300 = pneg %p77
      %p301 = scmp.lt.s32.totalorder %s21, 1
      %s302 = scalar_select %p301, %s21, 1
      %p303 = scmp.lt.s32.totalorder %s22, 0
      %s304 = scalar_select %p303, %s22, 0
      %s305 = sadd.s32 %s304, %s302
      %s306 = smul.addr %s305, 4
      %s307 = scalar_lea.vmem %s2, %s306
      %p308 = pneg %p108
      %p309 = pneg %p105
      %p310 = scmp.lt.s32.totalorder %s21, 1
      %s311 = scalar_select %p310, %s21, 1
      %p312 = scmp.lt.s32.totalorder %s22, 0
      %s313 = scalar_select %p312, %s22, 0
      %s314 = sadd.s32 %s313, %s311
      %s315 = smul.addr %s314, 4
      %s316 = scalar_lea.vmem %s3, %s315
      %p317 = pneg %p136
      %p318 = pneg %p133
      %p319 = pneg %p157
      %p320 = pneg %p154
      %p321 = pneg %p178
      %p322 = pneg %p175
      %p323 = pneg %p206
      %p324 = pneg %p203
      %s325 = smul.u32 2, %s22
      %p326 = scmp.lt.s32.totalorder %s21, 1
      %s327 = scalar_select %p326, %s21, 1
      %p328 = scmp.lt.s32.totalorder %s325, 1
      %s329 = scalar_select %p328, %s325, 1
      %s330 = smul.addr %s327, 2
      %s331 = sadd.s32 %s329, %s330
      %s332 = smul.addr %s331, 4
      %s333 = scalar_lea.vmem %s6, %s332
      %s334 = smul.u32 2, %s22
      %p335 = scmp.lt.s32.totalorder %s21, 1
      %s336 = scalar_select %p335, %s21, 1
      %p337 = scmp.lt.s32.totalorder %s334, 1
      %s338 = scalar_select %p337, %s334, 1
      %s339 = smul.addr %s336, 2
      %s340 = sadd.s32 %s338, %s339
      %s341 = smul.addr %s340, 2
      %s342 = scalar_lea.vmem %s0, %s341
      %s343 = smul.u32 2, %s22
      %p344 = scmp.lt.s32.totalorder %s21, 1
      %s345 = scalar_select %p344, %s21, 1
      %p346 = scmp.lt.s32.totalorder %s22, 0
      %s347 = scalar_select %p346, %s22, 0
      %s348 = sadd.s32 %s347, %s345
      %s349 = smul.addr %s348, 4
      %s350 = scalar_lea.vmem %s1, %s349
      %p351 = scmp.lt.s32.totalorder %s21, 1
      %s352 = scalar_select %p351, %s21, 1
      %p353 = scmp.lt.s32.totalorder %s22, 0
      %s354 = scalar_select %p353, %s22, 0
      %s355 = sadd.s32 %s354, %s352
      %s356 = smul.addr %s355, 4
      %s357 = scalar_lea.vmem %s2, %s356
      %p358 = scmp.lt.s32.totalorder %s21, 1
      %s359 = scalar_select %p358, %s21, 1
      %p360 = scmp.lt.s32.totalorder %s22, 0
      %s361 = scalar_select %p360, %s22, 0
      %s362 = sadd.s32 %s361, %s359
      %s363 = smul.addr %s362, 4
      %s364 = scalar_lea.vmem %s3, %s363
      %s365 = smul.u32 2, %s22
      %p366 = scmp.lt.s32.totalorder %s21, 1
      %s367 = scalar_select %p366, %s21, 1
      %p368 = scmp.lt.s32.totalorder %s365, 1
      %s369 = scalar_select %p368, %s365, 1
      %s370 = smul.addr %s367, 2
      %s371 = sadd.s32 %s369, %s370
      %s372 = smul.addr %s371, 4
      %s373 = scalar_lea.vmem %s6, %s372
      %s374 = smul.u32 2, %s22
      %v376 = vld [vmem:[%s350] sm:$0xf]
      %v377 = vld [vmem:[%s357] sm:$0xf]
      %v378 = vld [vmem:[%s364] sm:$0xf]
      %v379 = vunpack.c.l.bf16 %v376
      %v380 = vunpack.c.l.bf16 %v377
      %v381 = vmul.f32 %v380, 0.25
      %v382 = vmul.f32 %v379, 0.75
      %v383 = vadd.f32 %v381, %v382
      %vm384 = vcmask 130048
      %385 = vst.msk [vmem:[#allocation2] sm:$0xff] %vm384, %v383
      %v386 = vmul.f32 %v379, 0.25
      %388 = vrot.lane.b32.xlu0 %v386, 112
      %v389 = vpop.permute.xlu0 %388
      %v391 = vadd.f32 %v382, %v389
      %393 = vrot.lane.b32.xlu0 %v391, 16
      %v394 = vpop.permute.xlu0 %393
      %vm396 = vcmask 261248
      %397 = vst.msk [vmem:[#allocation2] sm:$0xff] %vm396, %v394
      %399 = vrot.lane.b32.xlu0 %v382, 112
      %v400 = vpop.permute.xlu0 %399
      %v402 = vadd.f32 %v386, %v400
      %404 = vrot.lane.b32.xlu0 %v402, 32
      %v405 = vpop.permute.xlu0 %404
      %vm407 = vcmask 392448
      %408 = vst.msk [vmem:[#allocation2] sm:$0xff] %vm407, %v405
      %409 = vrot.lane.b32.xlu0 %v391, 32
      %v410 = vpop.permute.xlu0 %409
      %vm412 = vcmask 523648
      %413 = vst.msk [vmem:[#allocation2] sm:$0xff] %vm412, %v410
      %414 = vrot.lane.b32.xlu0 %v402, 48
      %v415 = vpop.permute.xlu0 %414
      %vm417 = vcmask 654848
      %418 = vst.msk [vmem:[#allocation2] sm:$0xff] %vm417, %v415
      %419 = vrot.lane.b32.xlu0 %v391, 48
      %v420 = vpop.permute.xlu0 %419
      %vm422 = vcmask 786048
      %423 = vst.msk [vmem:[#allocation2] sm:$0xff] %vm422, %v420
      %424 = vrot.lane.b32.xlu0 %v402, 64
      %v425 = vpop.permute.xlu0 %424
      %vm427 = vcmask 917248
      %428 = vst.msk [vmem:[#allocation2] sm:$0xff] %vm427, %v425
      %429 = vrot.lane.b32.xlu0 %v391, 64
      %v430 = vpop.permute.xlu0 %429
      %vm432 = vcmask 1048448
      %433 = vst.msk [vmem:[#allocation2] sm:$0xff] %vm432, %v430
      %434 = vrot.lane.b32.xlu0 %v402, 80
      %v435 = vpop.permute.xlu0 %434
      %437 = vst.msk [vmem:[#allocation2 + $0x8] sm:$0xff] %vm384, %v435
      %438 = vrot.lane.b32.xlu0 %v391, 80
      %v439 = vpop.permute.xlu0 %438
      %441 = vst.msk [vmem:[#allocation2 + $0x8] sm:$0xff] %vm396, %v439
      %442 = vrot.lane.b32.xlu0 %v402, 96
      %v443 = vpop.permute.xlu0 %442
      %445 = vst.msk [vmem:[#allocation2 + $0x8] sm:$0xff] %vm407, %v443
      %446 = vrot.lane.b32.xlu0 %v391, 96
      %v447 = vpop.permute.xlu0 %446
      %449 = vst.msk [vmem:[#allocation2 + $0x8] sm:$0xff] %vm412, %v447
      %450 = vrot.lane.b32.xlu0 %v402, 112
      %v451 = vpop.permute.xlu0 %450
      %453 = vst.msk [vmem:[#allocation2 + $0x8] sm:$0xff] %vm417, %v451
      %454 = vrot.lane.b32.xlu0 %v391, 112
      %v455 = vpop.permute.xlu0 %454
      %457 = vst.msk [vmem:[#allocation2 + $0x8] sm:$0xff] %vm422, %v455
      %458 = vst.msk [vmem:[#allocation2 + $0x8] sm:$0xff] %vm427, %v402
      %v459 = vunpack.c.l.bf16 %v378
      %v460 = vmul.f32 %v459, 0.25
      %462 = vrot.lane.b32.xlu0 %v460, 112
      %v463 = vpop.permute.xlu0 %462
      %v465 = vadd.f32 %v382, %v463
      %466 = vst.msk [vmem:[#allocation2 + $0x8] sm:$0xff] %vm432, %v465
      %v467 = vld [vmem:[%s342] sm:$0xf]
      %v468 = vld [vmem:[#allocation2] sm:$0xff]
      %v469 = vld [vmem:[#allocation2 + $0x8] sm:$0xff]
      %v470 = vld [vmem:[%s4] sm:$0xf]
      %472 = vst [vmem:[#allocation1] ss:$4 sm:$0xff] %v467
      %v473 = vld.sshfl [vmem:[#allocation1] sm:$0xff pattern:$0x73625140]
      %v474 = vld.sshfl [vmem:[#allocation1 + $0x8] sm:$0xff pattern:$0x73625140]
      %vm475 = vcmask 31744
      %v477 = vsel %vm475, %v470, 0
      %vm479 = vcmask 1041408
      %v480 = vsel %vm479, %v473, 0
      %v482 = vsel %vm479, %v474, 0
      %484 = vmatpush.bf16.msra.mxu0 0
      %485 = vmatpush.bf16.msra.mxu0 0
      %486 = vmatpush.bf16.msra.mxu0 0
      %487 = vmatpush.bf16.msra.mxu0 0
      %488 = vmatpush.bf16.msra.mxu0 0
      %489 = vmatpush.bf16.msra.mxu0 0
      %490 = vmatpush.bf16.msra.mxu0 0
      %491 = vmatpush.bf16.msra.mxu0 %v480
      %492 = vmatmul.bf16.gmra.mxu0 %v477
      %v493 = vpop.f32.mrf.mxu0
      %v494 = vadd.f32 0.0, %v493
      %v495 = vpop.f32.mrf.mxu0
      %496 = vdwg.mxu0
      %497 = vmatpush.bf16.msra.mxu0 0
      %498 = vmatpush.bf16.msra.mxu0 0
      %499 = vmatpush.bf16.msra.mxu0 0
      %500 = vmatpush.bf16.msra.mxu0 0
      %501 = vmatpush.bf16.msra.mxu0 0
      %502 = vmatpush.bf16.msra.mxu0 0
      %503 = vmatpush.bf16.msra.mxu0 0
      %504 = vmatpush.bf16.msra.mxu0 %v482
      %505 = vmatmul.bf16.gmra.mxu0 %v477
      %v506 = vpop.f32.mrf.mxu0
      %v507 = vadd.f32 0.0, %v506
      %v508 = vpop.f32.mrf.mxu0
      %509 = vdwg.mxu0
      %v510 = vadd.f32 %v468, %v494
      %v511 = vadd.f32 %v469, %v507
      %v512 = vmax.f32 %v510, 0.0
      %v513 = vmax.f32 %v511, 0.0
      %v514 = vld [vmem:[%s5] sm:$0x1]
      %vm515 = vcmask 64512
      %v517 = vsel %vm515, %v514, 0
      %519 = vmatpush.msra.mxu0 0.0
      %520 = vmatpush.msra.mxu0 0.0
      %521 = vmatpush.msra.mxu0 0.0
      %522 = vmatpush.msra.mxu0 0.0
      %523 = vmatpush.msra.mxu0 0.0
      %524 = vmatpush.msra.mxu0 0.0
      %525 = vmatpush.msra.mxu0 0.0
      %526 = vmatpush.msra.mxu0 0.0
      %527 = vmatpush.msra.mxu0 0.0
      %528 = vmatpush.msra.mxu0 0.0
      %529 = vmatpush.msra.mxu0 0.0
      %530 = vmatpush.msra.mxu0 0.0
      %531 = vmatpush.msra.mxu0 0.0
      %532 = vmatpush.msra.mxu0 0.0
      %533 = vmatpush.msra.mxu0 0.0
      %534 = vmatpush.msra.mxu0 %v512
      %535 = vmatmul.f32.gmra.mxu0 %v517
      %v536 = vpop.f32.mrf.mxu0
      %v537 = vadd.f32 0.0, %v536
      %538 = vdwg.mxu0
      %539 = vmatpush.msra.mxu0 0.0
      %540 = vmatpush.msra.mxu0 0.0
      %541 = vmatpush.msra.mxu0 0.0
      %542 = vmatpush.msra.mxu0 0.0
      %543 = vmatpush.msra.mxu0 0.0
      %544 = vmatpush.msra.mxu0 0.0
      %545 = vmatpush.msra.mxu0 0.0
      %546 = vmatpush.msra.mxu0 0.0
      %547 = vmatpush.msra.mxu0 0.0
      %548 = vmatpush.msra.mxu0 0.0
      %549 = vmatpush.msra.mxu0 0.0
      %550 = vmatpush.msra.mxu0 0.0
      %551 = vmatpush.msra.mxu0 0.0
      %552 = vmatpush.msra.mxu0 0.0
      %553 = vmatpush.msra.mxu0 0.0
      %554 = vmatpush.msra.mxu0 %v513
      %555 = vmatmul.f32.gmra.mxu0 %v517
      %v556 = vpop.f32.mrf.mxu0
      %v557 = vadd.f32 0.0, %v556
      %558 = vdwg.mxu0
      %v559 = vxor.u32 %v537, 2147483648
      %v560 = vxor.u32 %v557, 2147483648
      %v561 = vmul.f32 %v559, 1.442695
      %v562 = vpow.pop %v561
      %v563 = vmul.f32 %v560, 1.442695
      %v564 = vpow.pop %v563
      %v565 = vadd.f32 %v562, 1.0
      %v566 = vadd.f32 %v564, 1.0
      %v567 = vrcp.pop %v565
      %v568 = vmul.f32 %v565, %v567
      %v569 = vsub.f32 1.0, %v568
      %v570 = vmul.f32 %v567, %v569
      %v571 = vadd.f32 %v567, %v570
      %vm572 = vweird.f32 %v565
      %vm573 = vweird.f32 %v567
      %vm574 = vmor %vm572, %vm573
      %v575 = vsel %vm574, %v567, %v571
      %v576 = vand.u32 2147483647, %v565
      %vm577 = vcmp.eq.f32.partialorder %v576, 8.507059e+37
      %v578 = vand.u32 %v565, 2147483648
      %v579 = vor.u32 1.1754944e-38, %v578
      %v580 = vsel %vm577, %v579, %v575
      %v581 = vmul.f32 1.0, %v580
      %v582 = vrcp.pop %v566
      %v583 = vmul.f32 %v566, %v582
      %v584 = vsub.f32 1.0, %v583
      %v585 = vmul.f32 %v582, %v584
      %v586 = vadd.f32 %v582, %v585
      %vm587 = vweird.f32 %v566
      %vm588 = vweird.f32 %v582
      %vm589 = vmor %vm587, %vm588
      %v590 = vsel %vm589, %v582, %v586
      %v591 = vand.u32 2147483647, %v566
      %vm592 = vcmp.eq.f32.partialorder %v591, 8.507059e+37
      %v593 = vand.u32 %v566, 2147483648
      %v594 = vor.u32 1.1754944e-38, %v593
      %v595 = vsel %vm592, %v594, %v590
      %v596 = vmul.f32 1.0, %v595
      %v597 = vunpack.c.l.bf16 %v467
      %v598 = vperm.slane %v581, 0
      %v599 = vperm.slane %v596, 0
      %v602 = vrot.slane %v599, 4
      %vm603 = vcmask 1043456
      %v604 = vsel %vm603, %v598, %v602
      %v606 = vmul.f32 %v597, %v604
      %607 = vst [vmem:[%s373] sm:$0xff] %v606
      %s608 = smul.u32 2, %s22
      %p609 = scmp.lt.s32.totalorder %s21, 1
      %s610 = scalar_select %p609, %s21, 1
      %p611 = scmp.lt.s32.totalorder %s608, 1
      %s612 = scalar_select %p611, %s608, 1
      %s613 = smul.addr %s610, 2
      %s614 = sadd.s32 %s612, %s613
      %s615 = smul.addr %s614, 4
      %s616 = scalar_lea.vmem %s6, %s615
      // Predicated region
      $region45: #{_attention_gates_impl.1} parent=43 // pred_check
        %p617 = pneg %p203
      $region46: #{_attention_gates_impl.1} parent=43 // pred_check_branch
        %619 = sbr.rel (%p617) target = $region48
      $region47: #{_attention_gates_impl.1} parent=43 // pred_region
        %s620 = smul.u32 2, %s22
      $region48: #{_attention_gates_impl.1} parent=43 // pred_fallthru
        _
    $region44: #{_attention_gates_impl.1} parent=5 // pred_fallthru
      _
    %p621 = scmp.le.s32.totalorder 2, %s12
    // Predicated region
    $region49: #{_attention_gates_impl.1} parent=5 // pred_check
      %p622 = pneg %p621
    $region50: #{_attention_gates_impl.1} parent=5 // pred_check_branch
      %624 = sbr.rel (%p622) target = $region52
    $region51: #{_attention_gates_impl.1} parent=5 // pred_region
      %s625 = ssub.s32 %s12, 2
      // Predicated region
      $region53: #{_attention_gates_impl.1} parent=51 // pred_check
        %p626 = pneg %p209
      $region54: #{_attention_gates_impl.1} parent=51 // pred_check_branch
        %628 = sbr.rel (%p626) target = $region56
      $region55: #{_attention_gates_impl.1} parent=51 // pred_region
        %s629 = smul.u32 2, %s24
        %p630 = scmp.lt.s32.totalorder %s23, 1
        %s631 = scalar_select %p630, %s23, 1
        %p632 = scmp.lt.s32.totalorder %s629, 1
        %s633 = scalar_select %p632, %s629, 1
        %s634 = smul.addr %s631, 2
        %s635 = sadd.s32 %s633, %s634
        %s636 = smul.addr %s635, 4
        %s637 = scalar_lea.vmem %s6, %s636
      $region56: #{_attention_gates_impl.1} parent=51 // pred_fallthru
        _
    $region52: #{_attention_gates_impl.1} parent=5 // pred_fallthru
      _
  $region6: #{_attention_gates_impl.1} parent=0 // loop_footer
    %s16 = sadd.s32 1, %s12
  $region7: #{_attention_gates_impl.1} parent=0 // loop_footer_branch
    %11 = sbr.rel target = $region3
  $region8: #{_attention_gates_impl.1} parent=0 // loop_exit
    _

</llo_original>
